<compile_context>
chip_gen: v7x
topology: tpu7x:2x2x1
jax: 0.10.0
libtpu: 0.0.40
codegen_flags: <defaults>
</compile_context>

<pallas_src>
import jax
import jax.numpy as jnp
from jax.experimental import pallas as pl
from jax.experimental.pallas import tpu as pltpu


def _round_up(x, n):
    return ((x + n - 1) // n) * n


_INV_SQRT2 = 0.7071067811865476


def _erf_f32(z):
    """erf via Abramowitz & Stegun 7.1.26 (max abs error ~1.5e-7)."""
    a1 = 0.254829592
    a2 = -0.284496736
    a3 = 1.421413741
    a4 = -1.453152027
    a5 = 1.061405429
    p = 0.3275911
    az = jnp.abs(z)
    d = 1.0 + p * az
    # EUP approximate reciprocal + one Newton-Raphson step: keeps the divide off
    # the (binding) VALU slot while restoring ~f32 accuracy.
    t = pl.reciprocal(d, approx=True)
    t = t * (2.0 - d * t)
    poly = ((((a5 * t + a4) * t + a3) * t + a2) * t + a1) * t
    y = 1.0 - poly * jnp.exp(-az * az)
    return jnp.where(z >= 0, y, -y)


def _gelu_exact_f32(x):
    # Exact GELU: 0.5 * x * (1 + erf(x / sqrt(2)))
    return 0.5 * x * (1.0 + _erf_f32(x * _INV_SQRT2))


def _intermediate_kernel(x_ref, w_ref, b_ref, o_ref):
    # MXU matmul in the native input dtype (bf16-friendly), f32 accumulation.
    acc = jnp.dot(x_ref[...], w_ref[...], preferred_element_type=jnp.float32)
    acc = acc + b_ref[...].astype(jnp.float32)          # (1, I) row broadcast
    o_ref[...] = _gelu_exact_f32(acc).astype(o_ref.dtype)


def yolos_intermediate(hidden_states, weight, bias, *, tm=256):
    """Pallas implementation of YolosIntermediate.forward.

    hidden_states: (batch, seq, hidden)
    weight:        (hidden, intermediate)   (transposed vs. nn.Linear.weight)
    bias:          (intermediate,)
    returns:       (batch, seq, intermediate)
    """
    batch, seq, hidden = hidden_states.shape
    assert weight.shape[0] == hidden, (weight.shape, hidden)
    inter = weight.shape[1]
    m = batch * seq
    dtype = hidden_states.dtype

    # Sublane multiple for the row tile: 8 (f32) / 16 (bf16) / 32 (i8/fp8).
    row_mult = {4: 8, 2: 16, 1: 32}.get(jnp.dtype(dtype).itemsize, 8)

    tm = max(row_mult, min(tm, _round_up(m, row_mult)))
    num_m = pl.cdiv(m, tm)
    if num_m < 2 and m > row_mult:
        # Give the v7x megacore (2 TCs) at least two parallel blocks to split.
        tm = _round_up(pl.cdiv(m, 2), row_mult)
        num_m = pl.cdiv(m, tm)

    x2d = hidden_states.reshape(m, hidden)       # free: merges leading dims
    w = weight
    b = bias.reshape(1, inter)

    # Zero-pad the contraction dim only if it isn't lane-aligned (never true for
    # YOLOS shapes).  M and N are never padded -> no activation-sized wrapper
    # copies; Pallas masks the ragged last M block on its own.
    if hidden % 128 != 0:
        kp = _round_up(hidden, 128)
        x2d = jnp.pad(x2d, ((0, 0), (0, kp - hidden)))
        w = jnp.pad(w, ((0, kp - hidden), (0, 0)))
    else:
        kp = hidden

    x_item = x2d.dtype.itemsize
    w_item = w.dtype.itemsize
    o_item = jnp.dtype(dtype).itemsize

    cost = pl.CostEstimate(
        flops=2 * m * kp * inter,
        transcendentals=2 * m * inter,           # exp + reciprocal per element
        bytes_accessed=(m * kp * x_item          # x read once
                        + kp * inter * w_item    # weight read once (resident)
                        + inter * w_item         # bias read once
                        + m * inter * o_item),   # output written once
    )

    # Conservative VMEM budget (assumes everything double-buffered + headroom
    # for in-kernel f32 temporaries); explicit so the f32 weight-resident layout
    # also compiles under v5e's 16 MiB default scoped-VMEM limit.
    vmem_bytes = 2 * (tm * kp * x_item + kp * inter * w_item
                      + inter * w_item + tm * inter * o_item)
    vmem_limit = min(int(vmem_bytes * 2) + (4 << 20), 100 << 20)

    def build(single_buffer_resident):
        res_kw = ({"pipeline_mode": pl.Buffered(1)}
                  if single_buffer_resident else {})
        return pl.pallas_call(
            _intermediate_kernel,
            out_shape=jax.ShapeDtypeStruct((m, inter), dtype),
            grid_spec=pltpu.PrefetchScalarGridSpec(
                num_scalar_prefetch=0,
                grid=(num_m,),
                in_specs=[
                    # x row tile: streamed / double-buffered over the grid.
                    pl.BlockSpec((tm, kp), lambda i: (i, 0)),
                    # Weight: constant block index -> fetched once, VMEM-resident.
                    pl.BlockSpec((kp, inter), lambda i: (0, 0), **res_kw),
                    # Bias: constant block index -> fetched once, VMEM-resident.
                    pl.BlockSpec((1, inter), lambda i: (0, 0), **res_kw),
                ],
                out_specs=pl.BlockSpec((tm, inter), lambda i: (i, 0)),
            ),
            compiler_params=pltpu.CompilerParams(
                dimension_semantics=("parallel",),
                vmem_limit_bytes=vmem_limit),
            cost_estimate=cost,
        )

    try:
        out = build(True)(x2d, w, b)
    except Exception:
        # Fallback if this JAX build rejects single-buffered (Buffered(1)) specs.
        out = build(False)(x2d, w, b)

    return out.reshape(batch, seq, inter)


def _reference(hidden_states, weight, bias):
    """Pure-JAX reference: Linear + exact GELU (matches HF ACT2FN['gelu'])."""
    h = (jnp.dot(hidden_states.astype(jnp.float32), weight.astype(jnp.float32),
                 precision=jax.lax.Precision.HIGHEST)
         + bias.astype(jnp.float32))
    return jax.nn.gelu(h, approximate=False).astype(hidden_states.dtype)


if __name__ == "__main__":
    # Small YolosIntermediate config: hidden_size=128, intermediate_size=512.
    batch, seq = 2, 8
    hidden_size, intermediate_size = 128, 512

    key = jax.random.PRNGKey(0)
    key, xk, wk, bk = jax.random.split(key, 4)

    x = jax.random.normal(xk, (batch, seq, hidden_size), dtype=jnp.float32)

    scale = 1.0 / jnp.sqrt(jnp.float32(hidden_size))
    weight = jax.random.uniform(wk, (hidden_size, intermediate_size), jnp.float32,
                                minval=-scale, maxval=scale)
    bias = jax.random.uniform(bk, (intermediate_size,), jnp.float32,
                              minval=-scale, maxval=scale)

    out = yolos_intermediate(x, weight, bias)
    out = jax.block_until_ready(out)

    ref = _reference(x, weight, bias)

    assert out.shape == (batch, seq, intermediate_size), out.shape
    err = float(jnp.max(jnp.abs(out.astype(jnp.float32) - ref.astype(jnp.float32))))
    # Tolerance covers the A&S erf approximation (~1.5e-7) and any MXU f32
    # matmul precision mode; structural bugs would be orders of magnitude larger.
    assert err < 5e-3, f"mismatch vs reference: max abs err = {err:e}"
    print("KERNEL_OK")
</pallas_src>

<mosaic_0001>
module attributes {stable_mosaic.version = 11 : i64} {
  func.func @_intermediate_kernel(%arg0: i32, %arg1: memref<8x128xf32, #tpu.memory_space<vmem>>, %arg2: memref<128x512xf32, #tpu.memory_space<vmem>>, %arg3: memref<1x512xf32, #tpu.memory_space<vmem>>, %arg4: memref<8x512xf32, #tpu.memory_space<vmem>>) attributes {dimension_semantics = [#tpu.dimension_semantics<parallel>], iteration_bounds = array<i64: 2>, scalar_prefetch = 0 : i64, scratch_operands = 0 : i64, tpu.core_type = #tpu.core_type<tc>, window_params = [{transform_indices = @transform_0, window_bounds = array<i64: 8, 128>}, {pipeline_mode = #tpu.pipeline_mode<synchronous>, transform_indices = @transform_1, window_bounds = array<i64: 128, 512>}, {pipeline_mode = #tpu.pipeline_mode<synchronous>, transform_indices = @transform_2, window_bounds = array<i64: 1, 512>}, {transform_indices = @transform_3, window_bounds = array<i64: 8, 512>}]} {
    %c0 = arith.constant 0 : index
    %c0_0 = arith.constant 0 : index
    %0 = vector.load %arg1[%c0, %c0_0] : memref<8x128xf32, #tpu.memory_space<vmem>>, vector<8x128xf32>
    %c0_1 = arith.constant 0 : index
    %c0_2 = arith.constant 0 : index
    %1 = vector.load %arg2[%c0_1, %c0_2] : memref<128x512xf32, #tpu.memory_space<vmem>>, vector<128x512xf32>
    %cst = arith.constant dense<0.000000e+00> : vector<8x512xf32>
    %2 = tpu.matmul %0, %1, %cst {dimension_numbers = #tpu.dot_dimension_numbers<[1], [0], [0], [1], [0, 0, 1, 1], [], []>} : vector<8x128xf32>, vector<128x512xf32>, vector<8x512xf32> -> vector<8x512xf32>
    %c0_3 = arith.constant 0 : index
    %c0_4 = arith.constant 0 : index
    %3 = vector.load %arg3[%c0_3, %c0_4] : memref<1x512xf32, #tpu.memory_space<vmem>>, vector<1x512xf32>
    %4 = vector.broadcast %3 : vector<1x512xf32> to vector<8x512xf32>
    %5 = arith.addf %2, %4 : vector<8x512xf32>
    %cst_5 = arith.constant 5.000000e-01 : f32
    %6 = vector.broadcast %cst_5 : f32 to vector<8x512xf32>
    %7 = arith.mulf %6, %5 : vector<8x512xf32>
    %cst_6 = arith.constant 0.707106769 : f32
    %8 = vector.broadcast %cst_6 : f32 to vector<8x512xf32>
    %9 = arith.mulf %5, %8 : vector<8x512xf32>
    %10 = math.absf %9 : vector<8x512xf32>
    %cst_7 = arith.constant 0.327591091 : f32
    %11 = vector.broadcast %cst_7 : f32 to vector<8x512xf32>
    %12 = arith.mulf %11, %10 : vector<8x512xf32>
    %cst_8 = arith.constant 1.000000e+00 : f32
    %13 = vector.broadcast %cst_8 : f32 to vector<8x512xf32>
    %14 = arith.addf %13, %12 : vector<8x512xf32>
    %15 = tpu.reciprocal %14 {approx = true} : vector<8x512xf32> -> vector<8x512xf32>
    %16 = arith.mulf %14, %15 : vector<8x512xf32>
    %cst_9 = arith.constant 2.000000e+00 : f32
    %17 = vector.broadcast %cst_9 : f32 to vector<8x512xf32>
    %18 = arith.subf %17, %16 : vector<8x512xf32>
    %19 = arith.mulf %15, %18 : vector<8x512xf32>
    %cst_10 = arith.constant 1.06140542 : f32
    %20 = vector.broadcast %cst_10 : f32 to vector<8x512xf32>
    %21 = arith.mulf %20, %19 : vector<8x512xf32>
    %cst_11 = arith.constant -1.45315206 : f32
    %22 = vector.broadcast %cst_11 : f32 to vector<8x512xf32>
    %23 = arith.addf %21, %22 : vector<8x512xf32>
    %24 = arith.mulf %23, %19 : vector<8x512xf32>
    %cst_12 = arith.constant 1.42141378 : f32
    %25 = vector.broadcast %cst_12 : f32 to vector<8x512xf32>
    %26 = arith.addf %24, %25 : vector<8x512xf32>
    %27 = arith.mulf %26, %19 : vector<8x512xf32>
    %cst_13 = arith.constant -0.284496725 : f32
    %28 = vector.broadcast %cst_13 : f32 to vector<8x512xf32>
    %29 = arith.addf %27, %28 : vector<8x512xf32>
    %30 = arith.mulf %29, %19 : vector<8x512xf32>
    %cst_14 = arith.constant 0.254829586 : f32
    %31 = vector.broadcast %cst_14 : f32 to vector<8x512xf32>
    %32 = arith.addf %30, %31 : vector<8x512xf32>
    %33 = arith.mulf %32, %19 : vector<8x512xf32>
    %cst_15 = arith.constant 0.000000e+00 : f32
    %34 = vector.broadcast %cst_15 : f32 to vector<8x512xf32>
    %35 = arith.subf %34, %10 : vector<8x512xf32>
    %36 = arith.mulf %35, %10 : vector<8x512xf32>
    %37 = math.exp %36 : vector<8x512xf32>
    %38 = arith.mulf %33, %37 : vector<8x512xf32>
    %cst_16 = arith.constant 1.000000e+00 : f32
    %39 = vector.broadcast %cst_16 : f32 to vector<8x512xf32>
    %40 = arith.subf %39, %38 : vector<8x512xf32>
    %cst_17 = arith.constant 0.000000e+00 : f32
    %41 = vector.broadcast %cst_17 : f32 to vector<8x512xf32>
    %42 = arith.cmpf oge, %9, %41 : vector<8x512xf32>
    %cst_18 = arith.constant 0.000000e+00 : f32
    %43 = vector.broadcast %cst_18 : f32 to vector<8x512xf32>
    %44 = arith.subf %43, %40 : vector<8x512xf32>
    %45 = arith.select %42, %40, %44 : vector<8x512xi1>, vector<8x512xf32>
    %cst_19 = arith.constant 1.000000e+00 : f32
    %46 = vector.broadcast %cst_19 : f32 to vector<8x512xf32>
    %47 = arith.addf %46, %45 : vector<8x512xf32>
    %48 = arith.mulf %7, %47 : vector<8x512xf32>
    %c0_20 = arith.constant 0 : index
    %c0_21 = arith.constant 0 : index
    %49 = vector.load %arg4[%c0_20, %c0_21] : memref<8x512xf32, #tpu.memory_space<vmem>>, vector<8x512xf32>
    tpu.vector_store %arg4[%c0_20, %c0_21], %48 {strides = array<i32>} : memref<8x512xf32, #tpu.memory_space<vmem>>, vector<8x512xf32>,
    return
  }
  func.func @transform_0(%arg0: i32) -> (i32, i32) {
    %c0_i32 = arith.constant 0 : i32
    %c0_i32_0 = arith.constant 0 : i32
    return %arg0, %c0_i32 : i32, i32
  }
  func.func @transform_1(%arg0: i32) -> (i32, i32) {
    %c0_i32 = arith.constant 0 : i32
    %c0_i32_0 = arith.constant 0 : i32
    %c0_i32_1 = arith.constant 0 : i32
    return %c0_i32, %c0_i32_0 : i32, i32
  }
  func.func @transform_2(%arg0: i32) -> (i32, i32) {
    %c0_i32 = arith.constant 0 : i32
    %c0_i32_0 = arith.constant 0 : i32
    %c0_i32_1 = arith.constant 0 : i32
    return %c0_i32, %c0_i32_0 : i32, i32
  }
  func.func @transform_3(%arg0: i32) -> (i32, i32) {
    %c0_i32 = arith.constant 0 : i32
    %c0_i32_0 = arith.constant 0 : i32
    return %arg0, %c0_i32 : i32, i32
  }
}

module attributes {stable_mosaic.version = 11 : i64} {
  func.func @_intermediate_kernel(%arg0: i32, %arg1: memref<8x128xf32, #tpu.memory_space<vmem>>, %arg2: memref<128x512xf32, #tpu.memory_space<vmem>>, %arg3: memref<1x512xf32, #tpu.memory_space<vmem>>, %arg4: memref<8x512xf32, #tpu.memory_space<vmem>>) attributes {dimension_semantics = [#tpu.dimension_semantics<parallel>], iteration_bounds = array<i64: 2>, scalar_prefetch = 0 : i64, scratch_operands = 0 : i64, tpu.core_type = #tpu.core_type<tc>, window_params = [{transform_indices = @transform_0, window_bounds = array<i64: 8, 128>}, {pipeline_mode = #tpu.pipeline_mode<synchronous>, transform_indices = @transform_1, window_bounds = array<i64: 128, 512>}, {pipeline_mode = #tpu.pipeline_mode<synchronous>, transform_indices = @transform_2, window_bounds = array<i64: 1, 512>}, {transform_indices = @transform_3, window_bounds = array<i64: 8, 512>}]} {
    %c0 = arith.constant 0 : index
    %c0_0 = arith.constant 0 : index
    %0 = vector.load %arg1[%c0, %c0_0] : memref<8x128xf32, #tpu.memory_space<vmem>>, vector<8x128xf32>
    %c0_1 = arith.constant 0 : index
    %c0_2 = arith.constant 0 : index
    %1 = vector.load %arg2[%c0_1, %c0_2] : memref<128x512xf32, #tpu.memory_space<vmem>>, vector<128x512xf32>
    %cst = arith.constant dense<0.000000e+00> : vector<8x512xf32>
    %2 = tpu.matmul %0, %1, %cst {dimension_numbers = #tpu.dot_dimension_numbers<[1], [0], [0], [1], [0, 0, 1, 1], [], []>} : vector<8x128xf32>, vector<128x512xf32>, vector<8x512xf32> -> vector<8x512xf32>
    %c0_3 = arith.constant 0 : index
    %c0_4 = arith.constant 0 : index
    %3 = vector.load %arg3[%c0_3, %c0_4] : memref<1x512xf32, #tpu.memory_space<vmem>>, vector<1x512xf32>
    %4 = vector.broadcast %3 : vector<1x512xf32> to vector<8x512xf32>
    %5 = arith.addf %2, %4 : vector<8x512xf32>
    %cst_5 = arith.constant 5.000000e-01 : f32
    %6 = vector.broadcast %cst_5 : f32 to vector<8x512xf32>
    %7 = arith.mulf %6, %5 : vector<8x512xf32>
    %cst_6 = arith.constant 0.707106769 : f32
    %8 = vector.broadcast %cst_6 : f32 to vector<8x512xf32>
    %9 = arith.mulf %5, %8 : vector<8x512xf32>
    %10 = math.absf %9 : vector<8x512xf32>
    %cst_7 = arith.constant 0.327591091 : f32
    %11 = vector.broadcast %cst_7 : f32 to vector<8x512xf32>
    %12 = arith.mulf %11, %10 : vector<8x512xf32>
    %cst_8 = arith.constant 1.000000e+00 : f32
    %13 = vector.broadcast %cst_8 : f32 to vector<8x512xf32>
    %14 = arith.addf %13, %12 : vector<8x512xf32>
    %15 = tpu.reciprocal %14 {approx = true} : vector<8x512xf32> -> vector<8x512xf32>
    %16 = arith.mulf %14, %15 : vector<8x512xf32>
    %cst_9 = arith.constant 2.000000e+00 : f32
    %17 = vector.broadcast %cst_9 : f32 to vector<8x512xf32>
    %18 = arith.subf %17, %16 : vector<8x512xf32>
    %19 = arith.mulf %15, %18 : vector<8x512xf32>
    %cst_10 = arith.constant 1.06140542 : f32
    %20 = vector.broadcast %cst_10 : f32 to vector<8x512xf32>
    %21 = arith.mulf %20, %19 : vector<8x512xf32>
    %cst_11 = arith.constant -1.45315206 : f32
    %22 = vector.broadcast %cst_11 : f32 to vector<8x512xf32>
    %23 = arith.addf %21, %22 : vector<8x512xf32>
    %24 = arith.mulf %23, %19 : vector<8x512xf32>
    %cst_12 = arith.constant 1.42141378 : f32
    %25 = vector.broadcast %cst_12 : f32 to vector<8x512xf32>
    %26 = arith.addf %24, %25 : vector<8x512xf32>
    %27 = arith.mulf %26, %19 : vector<8x512xf32>
    %cst_13 = arith.constant -0.284496725 : f32
    %28 = vector.broadcast %cst_13 : f32 to vector<8x512xf32>
    %29 = arith.addf %27, %28 : vector<8x512xf32>
    %30 = arith.mulf %29, %19 : vector<8x512xf32>
    %cst_14 = arith.constant 0.254829586 : f32
    %31 = vector.broadcast %cst_14 : f32 to vector<8x512xf32>
    %32 = arith.addf %30, %31 : vector<8x512xf32>
    %33 = arith.mulf %32, %19 : vector<8x512xf32>
    %cst_15 = arith.constant 0.000000e+00 : f32
    %34 = vector.broadcast %cst_15 : f32 to vector<8x512xf32>
    %35 = arith.subf %34, %10 : vector<8x512xf32>
    %36 = arith.mulf %35, %10 : vector<8x512xf32>
    %37 = math.exp %36 : vector<8x512xf32>
    %38 = arith.mulf %33, %37 : vector<8x512xf32>
    %cst_16 = arith.constant 1.000000e+00 : f32
    %39 = vector.broadcast %cst_16 : f32 to vector<8x512xf32>
    %40 = arith.subf %39, %38 : vector<8x512xf32>
    %cst_17 = arith.constant 0.000000e+00 : f32
    %41 = vector.broadcast %cst_17 : f32 to vector<8x512xf32>
    %42 = arith.cmpf oge, %9, %41 : vector<8x512xf32>
    %cst_18 = arith.constant 0.000000e+00 : f32
    %43 = vector.broadcast %cst_18 : f32 to vector<8x512xf32>
    %44 = arith.subf %43, %40 : vector<8x512xf32>
    %45 = arith.select %42, %40, %44 : vector<8x512xi1>, vector<8x512xf32>
    %cst_19 = arith.constant 1.000000e+00 : f32
    %46 = vector.broadcast %cst_19 : f32 to vector<8x512xf32>
    %47 = arith.addf %46, %45 : vector<8x512xf32>
    %48 = arith.mulf %7, %47 : vector<8x512xf32>
    %c0_20 = arith.constant 0 : index
    %c0_21 = arith.constant 0 : index
    %49 = vector.load %arg4[%c0_20, %c0_21] : memref<8x512xf32, #tpu.memory_space<vmem>>, vector<8x512xf32>
    tpu.vector_store %arg4[%c0_20, %c0_21], %48 {strides = array<i32>} : memref<8x512xf32, #tpu.memory_space<vmem>>, vector<8x512xf32>,
    return
  }
  func.func @transform_0(%arg0: i32) -> (i32, i32) {
    %c0_i32 = arith.constant 0 : i32
    %c0_i32_0 = arith.constant 0 : i32
    return %arg0, %c0_i32 : i32, i32
  }
  func.func @transform_1(%arg0: i32) -> (i32, i32) {
    %c0_i32 = arith.constant 0 : i32
    %c0_i32_0 = arith.constant 0 : i32
    %c0_i32_1 = arith.constant 0 : i32
    return %c0_i32, %c0_i32_0 : i32, i32
  }
  func.func @transform_2(%arg0: i32) -> (i32, i32) {
    %c0_i32 = arith.constant 0 : i32
    %c0_i32_0 = arith.constant 0 : i32
    %c0_i32_1 = arith.constant 0 : i32
    return %c0_i32, %c0_i32_0 : i32, i32
  }
  func.func @transform_3(%arg0: i32) -> (i32, i32) {
    %c0_i32 = arith.constant 0 : i32
    %c0_i32_0 = arith.constant 0 : i32
    return %arg0, %c0_i32 : i32, i32
  }
}

</mosaic_0001>

<llo_original>
// kernel: tpu_custom_call.1
$region0: #{tpu_custom_call.1}
  #allocation0 [shape = 'u32[]', space=smem, size = 0x4, offset = 0x4, fixed_abs, tag = 'smem constant byte address 0x4 - core index']
  #allocation1 [shape = 'u32[144,128]{1,0:T(1,128)}', space=vmem, size = 0x12000, scoped, tag = 'internal scratch']
  %s0 = inlined_call_operand.hbm [shape: f32[16,128], index: 0, kind: input, shape index: {}]
  %s1 = inlined_call_operand.hbm [shape: f32[128,512], index: 1, kind: input, shape index: {}]
  %s2 = inlined_call_operand.vmem [shape: f32[1,512], index: 2, kind: input, shape index: {}]
  %s3 = inlined_call_operand.hbm [shape: f32[16,512], index: 3, kind: output, shape index: {}]
  %s4 = sld [smem:[#allocation0]]
  $region53: #{tpu_custom_call.1} parent=0
    _
  %s6 = ssub.s32 1, %s4
  %s7 = scalar_select 0, %s6, %s4
  $region1: #{tpu_custom_call.1} parent=0
    #allocation2 [shape = 'u8[8192]{0}', space=vmem, size = 0x2000, scoped, tag = 'input window, operand 0']
    #allocation3 [shape = 's32[2]{0}', space=sflag, size = 0x8, scoped, tag = 'scoped memory for tpu_custom_call.1']
    #allocation4 [shape = 's32[2]{0}', space=sflag, size = 0x8, scoped, tag = 'scoped memory for tpu_custom_call.1']
    #allocation5 [shape = 'u8[262144]{0}', space=vmem, size = 0x40000, scoped, tag = 'input window, operand 1, single buffered']
    #allocation6 [shape = 's32[1]{0}', space=sflag, size = 0x4, scoped, tag = 'scoped memory for tpu_custom_call.1']
    #allocation7 [shape = 'u8[32768]{0}', space=vmem, size = 0x8000, scoped, tag = 'output window, operand 0']
    %8 = vsyncpa [#allocation3], 0
    %s9 = scalar_lea.sflag [#allocation3], 1
    %10 = vsyncpa %s9, 0
    %11 = vsyncpa [#allocation6], 0
    %12 = vsyncpa [#allocation4], 0
    %s13 = scalar_lea.sflag [#allocation4], 1
    %14 = vsyncpa %s13, 0
    loop: start=0, step=1, limit=4
    $region2: #{tpu_custom_call.1} parent=1 // loop_pre_header
      _
    $region3: #{tpu_custom_call.1} parent=1 // loop_header
      %s16 = sphi 0, %s20
      %p17 = scmp.ge.s32.totalorder %s16, 4
      %s26 = sphi 0, %s28
      %s29 = sphi 0, %s26
      %s30 = sphi 0, %s29
      %s46 = sphi 0, %s30
      %s50 = sphi 0, %s50
      %s52 = sphi 0, %s50
      %s53 = sphi 0, %s52
      %s67 = sphi 0, %s53
      %s71 = sphi 0, %s71
      %s73 = sphi 0, %s71
      %s74 = sphi 0, %s73
      %s88 = sphi 0, %s74
      %s94 = sphi 0, %s96
      %s97 = sphi 0, %s94
      %s98 = sphi 0, %s97
      %s114 = sphi 0, %s98
    $region4: #{tpu_custom_call.1} parent=1 // loop_header_branch
      %19 = sbr.rel (%p17) target = $region8
    $region5: #{tpu_custom_call.1} parent=1 // loop_body
      %s21 = ssub.s32 %s16, 1
      %s22 = ssub.s32 %s16, 2
      %s23 = sadd.s32 %s16, 1
      %s24 = ssub.s32 %s16, %s23
      %p25 = scmp.eq.s32.totalorder %s24, 0
      %s27 = sadd.s32 %s26, 1
      %s28 = scalar_select %p25, %s26, %s27
      %p31 = pneg %p25
      %p32 = scmp.eq.s32.totalorder %s16, 1
      %p33 = por %p31, %p32
      %p34 = scmp.ne.s32.totalorder %s26, %s29
      %p35 = scmp.eq.s32.totalorder %s16, 0
      %p36 = por %p34, %p35
      %p37 = scmp.ne.s32.totalorder %s26, %s29
      %p38 = scmp.eq.s32.totalorder %s21, 1
      %p39 = por %p37, %p38
      %p40 = scmp.ne.s32.totalorder %s29, %s30
      %p41 = scmp.eq.s32.totalorder %s21, 0
      %p42 = por %p40, %p41
      %p43 = scmp.ne.s32.totalorder %s29, %s30
      %p44 = scmp.eq.s32.totalorder %s22, 1
      %p45 = por %p43, %p44
      %p47 = scmp.ne.s32.totalorder %s30, %s46
      %p48 = scmp.eq.s32.totalorder %s22, 0
      %p49 = por %p47, %p48
      %s51 = sadd.s32 %s50, 1
      %p54 = scmp.eq.s32.totalorder %s16, 1
      %p55 = scmp.ne.s32.totalorder %s50, %s52
      %p56 = scmp.eq.s32.totalorder %s16, 0
      %p57 = por %p55, %p56
      %p58 = scmp.ne.s32.totalorder %s50, %s52
      %p59 = scmp.eq.s32.totalorder %s21, 1
      %p60 = por %p58, %p59
      %p61 = scmp.ne.s32.totalorder %s52, %s53
      %p62 = scmp.eq.s32.totalorder %s21, 0
      %p63 = por %p61, %p62
      %p64 = scmp.ne.s32.totalorder %s52, %s53
      %p65 = scmp.eq.s32.totalorder %s22, 1
      %p66 = por %p64, %p65
      %p68 = scmp.ne.s32.totalorder %s53, %s67
      %p69 = scmp.eq.s32.totalorder %s22, 0
      %p70 = por %p68, %p69
      %s72 = sadd.s32 %s71, 1
      %p75 = scmp.eq.s32.totalorder %s16, 1
      %p76 = scmp.ne.s32.totalorder %s71, %s73
      %p77 = scmp.eq.s32.totalorder %s16, 0
      %p78 = por %p76, %p77
      %p79 = scmp.ne.s32.totalorder %s71, %s73
      %p80 = scmp.eq.s32.totalorder %s21, 1
      %p81 = por %p79, %p80
      %p82 = scmp.ne.s32.totalorder %s73, %s74
      %p83 = scmp.eq.s32.totalorder %s21, 0
      %p84 = por %p82, %p83
      %p85 = scmp.ne.s32.totalorder %s73, %s74
      %p86 = scmp.eq.s32.totalorder %s22, 1
      %p87 = por %p85, %p86
      %p89 = scmp.ne.s32.totalorder %s74, %s88
      %p90 = scmp.eq.s32.totalorder %s22, 0
      %p91 = por %p89, %p90
      %s92 = ssub.s32 %s16, %s23
      %p93 = scmp.eq.s32.totalorder %s92, 0
      %s95 = sadd.s32 %s94, 1
      %s96 = scalar_select %p93, %s94, %s95
      %p99 = pneg %p93
      %p100 = scmp.eq.s32.totalorder %s16, 1
      %p101 = por %p99, %p100
      %p102 = scmp.ne.s32.totalorder %s94, %s97
      %p103 = scmp.eq.s32.totalorder %s16, 0
      %p104 = por %p102, %p103
      %p105 = scmp.ne.s32.totalorder %s94, %s97
      %p106 = scmp.eq.s32.totalorder %s21, 1
      %p107 = por %p105, %p106
      %p108 = scmp.ne.s32.totalorder %s97, %s98
      %p109 = scmp.eq.s32.totalorder %s21, 0
      %p110 = por %p108, %p109
      %p111 = scmp.ne.s32.totalorder %s97, %s98
      %p112 = scmp.eq.s32.totalorder %s22, 1
      %p113 = por %p111, %p112
      %p115 = scmp.ne.s32.totalorder %s98, %s114
      %p116 = scmp.eq.s32.totalorder %s22, 0
      %p117 = por %p115, %p116
      %p118 = scmp.le.s32.totalorder 1, %s16
      %p119 = scmp.lt.s32.totalorder %s16, 3
      %p120 = pnand %p118, %p119
      %p121 = pneg %p120
      // Predicated region
      $region9: #{tpu_custom_call.1} parent=5 // pred_check
        _
      $region10: #{tpu_custom_call.1} parent=5 // pred_check_branch
        %123 = sbr.rel (%p120) target = $region12
      $region11: #{tpu_custom_call.1} parent=5 // pred_region
        %s124 = ssub.s32 %s16, 1
        // Predicated region
        $region13: #{tpu_custom_call.1} parent=11 // pred_check
          %p125 = pneg %p63
        $region14: #{tpu_custom_call.1} parent=11 // pred_check_branch
          %127 = sbr.rel (%p125) target = $region16
        $region15: #{tpu_custom_call.1} parent=11 // pred_region
          %s129 = ssub.s32 8192, 8192
          %130 = vsyncadd [#allocation6], %s129
          %s131 = sshll.u32 [#allocation5], 4
          %s132 = int_to_ptr.vmem [resolvable:$true] %s131
          %137 = dma.hbm_to_vmem [thread:$0]  %s1, 8192, %s132, [#allocation6], 512, 512, 32
        $region16: #{tpu_custom_call.1} parent=11 // pred_fallthru
          _
        // Predicated region
        $region17: #{tpu_custom_call.1} parent=11 // pred_check
          %p138 = pneg %p84
        $region18: #{tpu_custom_call.1} parent=11 // pred_check_branch
          %140 = sbr.rel (%p138) target = $region20
        $region19: #{tpu_custom_call.1} parent=11 // pred_region
          _
        $region20: #{tpu_custom_call.1} parent=11 // pred_fallthru
          _
      $region12: #{tpu_custom_call.1} parent=5 // pred_fallthru
        _
      %p141 = scmp.lt.s32.totalorder %s16, 2
      // Predicated region
      $region21: #{tpu_custom_call.1} parent=5 // pred_check
        %p142 = pneg %p141
      $region22: #{tpu_custom_call.1} parent=5 // pred_check_branch
        %144 = sbr.rel (%p142) target = $region24
      $region23: #{tpu_custom_call.1} parent=5 // pred_region
        // Predicated region
        $region25: #{tpu_custom_call.1} parent=23 // pred_check
          %p145 = pneg %p36
        $region26: #{tpu_custom_call.1} parent=23 // pred_check_branch
          %147 = sbr.rel (%p145) target = $region28
        $region27: #{tpu_custom_call.1} parent=23 // pred_region
          %s148 = sand.u32 %s26, 1
          %s149 = scalar_lea.sflag [#allocation3], %s148
          %s150 = sand.u32 %s26, 1
          %s151 = smul.addr %s150, 8
          %s152 = scalar_lea.vmem [#allocation2], %s151
          %s154 = ssub.s32 128, 128
          %155 = vsyncadd %s149, %s154
          %s156 = smul.addr %s16, 128
          %s157 = scalar_lea.hbm %s0, %s156
          %s159 = sshll.u32 %s152, 4
          %s160 = int_to_ptr.vmem [resolvable:$true] %s159
          %162 = dma.hbm_to_vmem [thread:$0]  %s157, 128, %s160, %s149
        $region28: #{tpu_custom_call.1} parent=23 // pred_fallthru
          _
      $region24: #{tpu_custom_call.1} parent=5 // pred_fallthru
        _
      %p163 = scmp.le.s32.totalorder 1, %s16
      %p164 = scmp.lt.s32.totalorder %s16, 3
      %p165 = pnand %p163, %p164
      %p166 = pneg %p165
      // Predicated region
      $region29: #{tpu_custom_call.1} parent=5 // pred_check
        _
      $region30: #{tpu_custom_call.1} parent=5 // pred_check_branch
        %168 = sbr.rel (%p165) target = $region32
      $region31: #{tpu_custom_call.1} parent=5 // pred_region
        %s169 = ssub.s32 %s16, 1
        %s170 = sand.u32 %s29, 1
        %s171 = scalar_lea.sflag [#allocation3], %s170
        %s172 = sand.u32 %s29, 1
        %s173 = smul.addr %s172, 8
        %s174 = scalar_lea.vmem [#allocation2], %s173
        // Predicated region
        $region33: #{tpu_custom_call.1} parent=31 // pred_check
          %p175 = pneg %p42
        $region34: #{tpu_custom_call.1} parent=31 // pred_check_branch
          %177 = sbr.rel (%p175) target = $region36
        $region35: #{tpu_custom_call.1} parent=31 // pred_region
          %178 = dma.done %s171, 128
        $region36: #{tpu_custom_call.1} parent=31 // pred_fallthru
          _
        // Predicated region
        $region37: #{tpu_custom_call.1} parent=31 // pred_check
          %p179 = pneg %p63
        $region38: #{tpu_custom_call.1} parent=31 // pred_check_branch
          %181 = sbr.rel (%p179) target = $region40
        $region39: #{tpu_custom_call.1} parent=31 // pred_region
          %182 = dma.done [#allocation6], 8192
        $region40: #{tpu_custom_call.1} parent=31 // pred_fallthru
          _
        %s183 = sand.u32 %s29, 1
        %s184 = scalar_lea.sflag [#allocation3], %s183
        %s185 = sand.u32 %s29, 1
        %s186 = smul.addr %s185, 8
        %s187 = scalar_lea.vmem [#allocation2], %s186
        %p188 = pneg %p42
        %p189 = pneg %p39
        %p190 = pneg %p63
        %p191 = pneg %p60
        %p192 = pneg %p84
        %p193 = pneg %p81
        %p194 = pneg %p110
        %p195 = pneg %p107
        %s196 = sand.u32 %s97, 1
        %s197 = scalar_lea.sflag [#allocation4], %s196
        %s198 = sand.u32 %s97, 1
        %s199 = smul.addr %s198, 32
        %s200 = scalar_lea.vmem [#allocation7], %s199
        %v201 = vld [vmem:[%s174] sm:$0xff]
        %v202 = vld [vmem:[#allocation5] sm:$0xff]
        %v203 = vld [vmem:[#allocation5 + $0x8] sm:$0xff]
        %v204 = vld [vmem:[#allocation5 + $0x10] sm:$0xff]
        %v205 = vld [vmem:[#allocation5 + $0x18] sm:$0xff]
        %v206 = vld [vmem:[#allocation5 + $0x20] sm:$0xff]
        %v207 = vld [vmem:[#allocation5 + $0x28] sm:$0xff]
        %v208 = vld [vmem:[#allocation5 + $0x30] sm:$0xff]
        %v209 = vld [vmem:[#allocation5 + $0x38] sm:$0xff]
        %v210 = vld [vmem:[#allocation5 + $0x40] sm:$0xff]
        %v211 = vld [vmem:[#allocation5 + $0x48] sm:$0xff]
        %v212 = vld [vmem:[#allocation5 + $0x50] sm:$0xff]
        %v213 = vld [vmem:[#allocation5 + $0x58] sm:$0xff]
        %v214 = vld [vmem:[#allocation5 + $0x60] sm:$0xff]
        %v215 = vld [vmem:[#allocation5 + $0x68] sm:$0xff]
        %v216 = vld [vmem:[#allocation5 + $0x70] sm:$0xff]
        %v217 = vld [vmem:[#allocation5 + $0x78] sm:$0xff]
        %v218 = vld [vmem:[#allocation5 + $0x80] sm:$0xff]
        %v219 = vld [vmem:[#allocation5 + $0x88] sm:$0xff]
        %v220 = vld [vmem:[#allocation5 + $0x90] sm:$0xff]
        %v221 = vld [vmem:[#allocation5 + $0x98] sm:$0xff]
        %v222 = vld [vmem:[#allocation5 + $0xa0] sm:$0xff]
        %v223 = vld [vmem:[#allocation5 + $0xa8] sm:$0xff]
        %v224 = vld [vmem:[#allocation5 + $0xb0] sm:$0xff]
        %v225 = vld [vmem:[#allocation5 + $0xb8] sm:$0xff]
        %v226 = vld [vmem:[#allocation5 + $0xc0] sm:$0xff]
        %v227 = vld [vmem:[#allocation5 + $0xc8] sm:$0xff]
        %v228 = vld [vmem:[#allocation5 + $0xd0] sm:$0xff]
        %v229 = vld [vmem:[#allocation5 + $0xd8] sm:$0xff]
        %v230 = vld [vmem:[#allocation5 + $0xe0] sm:$0xff]
        %v231 = vld [vmem:[#allocation5 + $0xe8] sm:$0xff]
        %v232 = vld [vmem:[#allocation5 + $0xf0] sm:$0xff]
        %v233 = vld [vmem:[#allocation5 + $0xf8] sm:$0xff]
        %v234 = vld [vmem:[#allocation5 + $0x100] sm:$0xff]
        %v235 = vld [vmem:[#allocation5 + $0x108] sm:$0xff]
        %v236 = vld [vmem:[#allocation5 + $0x110] sm:$0xff]
        %v237 = vld [vmem:[#allocation5 + $0x118] sm:$0xff]
        %v238 = vld [vmem:[#allocation5 + $0x120] sm:$0xff]
        %v239 = vld [vmem:[#allocation5 + $0x128] sm:$0xff]
        %v240 = vld [vmem:[#allocation5 + $0x130] sm:$0xff]
        %v241 = vld [vmem:[#allocation5 + $0x138] sm:$0xff]
        %v242 = vld [vmem:[#allocation5 + $0x140] sm:$0xff]
        %v243 = vld [vmem:[#allocation5 + $0x148] sm:$0xff]
        %v244 = vld [vmem:[#allocation5 + $0x150] sm:$0xff]
        %v245 = vld [vmem:[#allocation5 + $0x158] sm:$0xff]
        %v246 = vld [vmem:[#allocation5 + $0x160] sm:$0xff]
        %v247 = vld [vmem:[#allocation5 + $0x168] sm:$0xff]
        %v248 = vld [vmem:[#allocation5 + $0x170] sm:$0xff]
        %v249 = vld [vmem:[#allocation5 + $0x178] sm:$0xff]
        %v250 = vld [vmem:[#allocation5 + $0x180] sm:$0xff]
        %v251 = vld [vmem:[#allocation5 + $0x188] sm:$0xff]
        %v252 = vld [vmem:[#allocation5 + $0x190] sm:$0xff]
        %v253 = vld [vmem:[#allocation5 + $0x198] sm:$0xff]
        %v254 = vld [vmem:[#allocation5 + $0x1a0] sm:$0xff]
        %v255 = vld [vmem:[#allocation5 + $0x1a8] sm:$0xff]
        %v256 = vld [vmem:[#allocation5 + $0x1b0] sm:$0xff]
        %v257 = vld [vmem:[#allocation5 + $0x1b8] sm:$0xff]
        %v258 = vld [vmem:[#allocation5 + $0x1c0] sm:$0xff]
        %v259 = vld [vmem:[#allocation5 + $0x1c8] sm:$0xff]
        %v260 = vld [vmem:[#allocation5 + $0x1d0] sm:$0xff]
        %v261 = vld [vmem:[#allocation5 + $0x1d8] sm:$0xff]
        %v262 = vld [vmem:[#allocation5 + $0x1e0] sm:$0xff]
        %v263 = vld [vmem:[#allocation5 + $0x1e8] sm:$0xff]
        %v264 = vld [vmem:[#allocation5 + $0x1f0] sm:$0xff]
        %v265 = vld [vmem:[#allocation5 + $0x1f8] sm:$0xff]
        %v266 = vld [vmem:[%s2] sm:$0xf]
        %v268 = vlaneseq
        %v269 = vshrl.u32 %v268, 7
        %v270 = vsub.s32 0, %v269
        %v271 = vrot.slane %v266, %v270
        %v272 = vlaneseq
        %v273 = vshrl.u32 %v272, 7
        %v274 = vsub.s32 1, %v273
        %v275 = vrot.slane %v266, %v274
        %v276 = vlaneseq
        %v277 = vshrl.u32 %v276, 7
        %v278 = vsub.s32 2, %v277
        %v279 = vrot.slane %v266, %v278
        %v280 = vlaneseq
        %v281 = vshrl.u32 %v280, 7
        %v282 = vsub.s32 3, %v281
        %v283 = vrot.slane %v266, %v282
        %288 = vmatprep.subr.mxu0 %v203
        %289 = vmatpush1.msra.mxu0 %v202
        %290 = vmatprep.subr.mxu0 %v207
        %291 = vmatpush1.msra.mxu0 %v206
        %292 = vmatprep.subr.mxu0 %v211
        %293 = vmatpush1.msra.mxu0 %v210
        %294 = vmatprep.subr.mxu0 %v215
        %295 = vmatpush1.msra.mxu0 %v214
        %296 = vmatprep.subr.mxu0 %v219
        %297 = vmatpush1.msra.mxu0 %v218
        %298 = vmatprep.subr.mxu0 %v223
        %299 = vmatpush1.msra.mxu0 %v222
        %300 = vmatprep.subr.mxu0 %v227
        %301 = vmatpush1.msra.mxu0 %v226
        %302 = vmatprep.subr.mxu0 %v231
        %303 = vmatpush1.msra.mxu0 %v230
        %304 = vmatprep.subr.mxu0 %v235
        %305 = vmatpush1.msra.mxu0 %v234
        %306 = vmatprep.subr.mxu0 %v239
        %307 = vmatpush1.msra.mxu0 %v238
        %308 = vmatprep.subr.mxu0 %v243
        %309 = vmatpush1.msra.mxu0 %v242
        %310 = vmatprep.subr.mxu0 %v247
        %311 = vmatpush1.msra.mxu0 %v246
        %312 = vmatprep.subr.mxu0 %v251
        %313 = vmatpush1.msra.mxu0 %v250
        %314 = vmatprep.subr.mxu0 %v255
        %315 = vmatpush1.msra.mxu0 %v254
        %316 = vmatprep.subr.mxu0 %v259
        %317 = vmatpush1.msra.mxu0 %v258
        %318 = vmatprep.subr.mxu0 %v263
        %319 = vmatpush1.msra.mxu0 %v262
        %320 = vmatprep.subr.mxu0 0.0
        %321 = vmatpush1.msra.mxu0 0.0
        %322 = vmatprep.subr.mxu0 0.0
        %323 = vmatpush1.msra.mxu0 0.0
        %324 = vmatprep.subr.mxu0 0.0
        %325 = vmatpush1.msra.mxu0 0.0
        %326 = vmatprep.subr.mxu0 0.0
        %327 = vmatpush1.msra.mxu0 0.0
        %328 = vmatprep.subr.mxu0 0.0
        %329 = vmatpush1.msra.mxu0 0.0
        %330 = vmatprep.subr.mxu0 0.0
        %331 = vmatpush1.msra.mxu0 0.0
        %332 = vmatprep.subr.mxu0 0.0
        %333 = vmatpush1.msra.mxu0 0.0
        %334 = vmatprep.subr.mxu0 0.0
        %335 = vmatpush1.msra.mxu0 0.0
        %336 = vmatprep.subr.mxu0 0.0
        %337 = vmatpush1.msra.mxu0 0.0
        %338 = vmatprep.subr.mxu0 0.0
        %339 = vmatpush1.msra.mxu0 0.0
        %340 = vmatprep.subr.mxu0 0.0
        %341 = vmatpush1.msra.mxu0 0.0
        %342 = vmatprep.subr.mxu0 0.0
        %343 = vmatpush1.msra.mxu0 0.0
        %344 = vmatprep.subr.mxu0 0.0
        %345 = vmatpush1.msra.mxu0 0.0
        %346 = vmatprep.subr.mxu0 0.0
        %347 = vmatpush1.msra.mxu0 0.0
        %348 = vmatprep.subr.mxu0 0.0
        %349 = vmatpush1.msra.mxu0 0.0
        %350 = vmatprep.subr.mxu0 0.0
        %351 = vmatpush1.msra.mxu0 0.0
        %352 = vmatprep.mubr.f32.mxu0 0.0
        %353 = vmatmul.mubr.f32.gmra.mrb[0].mxu0 %v201
        %v354 = vpop.f32.mrb[0].mxu0
        %v355 = vadd.f32 %v271, %v354
        %v356 = vpop.f32.mrb[0].mxu0
        %v357 = vadd.f32 %v275, %v356
        %358 = vdwg.mxu0
        %359 = vmatprep.subr.mxu0 %v205
        %360 = vmatpush1.msra.mxu0 %v204
        %361 = vmatprep.subr.mxu0 %v209
        %362 = vmatpush1.msra.mxu0 %v208
        %363 = vmatprep.subr.mxu0 %v213
        %364 = vmatpush1.msra.mxu0 %v212
        %365 = vmatprep.subr.mxu0 %v217
        %366 = vmatpush1.msra.mxu0 %v216
        %367 = vmatprep.subr.mxu0 %v221
        %368 = vmatpush1.msra.mxu0 %v220
        %369 = vmatprep.subr.mxu0 %v225
        %370 = vmatpush1.msra.mxu0 %v224
        %371 = vmatprep.subr.mxu0 %v229
        %372 = vmatpush1.msra.mxu0 %v228
        %373 = vmatprep.subr.mxu0 %v233
        %374 = vmatpush1.msra.mxu0 %v232
        %375 = vmatprep.subr.mxu0 %v237
        %376 = vmatpush1.msra.mxu0 %v236
        %377 = vmatprep.subr.mxu0 %v241
        %378 = vmatpush1.msra.mxu0 %v240
        %379 = vmatprep.subr.mxu0 %v245
        %380 = vmatpush1.msra.mxu0 %v244
        %381 = vmatprep.subr.mxu0 %v249
        %382 = vmatpush1.msra.mxu0 %v248
        %383 = vmatprep.subr.mxu0 %v253
        %384 = vmatpush1.msra.mxu0 %v252
        %385 = vmatprep.subr.mxu0 %v257
        %386 = vmatpush1.msra.mxu0 %v256
        %387 = vmatprep.subr.mxu0 %v261
        %388 = vmatpush1.msra.mxu0 %v260
        %389 = vmatprep.subr.mxu0 %v265
        %390 = vmatpush1.msra.mxu0 %v264
        %391 = vmatprep.subr.mxu0 0.0
        %392 = vmatpush1.msra.mxu0 0.0
        %393 = vmatprep.subr.mxu0 0.0
        %394 = vmatpush1.msra.mxu0 0.0
        %395 = vmatprep.subr.mxu0 0.0
        %396 = vmatpush1.msra.mxu0 0.0
        %397 = vmatprep.subr.mxu0 0.0
        %398 = vmatpush1.msra.mxu0 0.0
        %399 = vmatprep.subr.mxu0 0.0
        %400 = vmatpush1.msra.mxu0 0.0
        %401 = vmatprep.subr.mxu0 0.0
        %402 = vmatpush1.msra.mxu0 0.0
        %403 = vmatprep.subr.mxu0 0.0
        %404 = vmatpush1.msra.mxu0 0.0
        %405 = vmatprep.subr.mxu0 0.0
        %406 = vmatpush1.msra.mxu0 0.0
        %407 = vmatprep.subr.mxu0 0.0
        %408 = vmatpush1.msra.mxu0 0.0
        %409 = vmatprep.subr.mxu0 0.0
        %410 = vmatpush1.msra.mxu0 0.0
        %411 = vmatprep.subr.mxu0 0.0
        %412 = vmatpush1.msra.mxu0 0.0
        %413 = vmatprep.subr.mxu0 0.0
        %414 = vmatpush1.msra.mxu0 0.0
        %415 = vmatprep.subr.mxu0 0.0
        %416 = vmatpush1.msra.mxu0 0.0
        %417 = vmatprep.subr.mxu0 0.0
        %418 = vmatpush1.msra.mxu0 0.0
        %419 = vmatprep.subr.mxu0 0.0
        %420 = vmatpush1.msra.mxu0 0.0
        %421 = vmatprep.subr.mxu0 0.0
        %422 = vmatpush1.msra.mxu0 0.0
        %423 = vmatprep.mubr.f32.mxu0 0.0
        %424 = vmatmul.mubr.f32.gmra.mrb[0].mxu0 %v201
        %v425 = vpop.f32.mrb[0].mxu0
        %v426 = vadd.f32 %v279, %v425
        %v427 = vpop.f32.mrb[0].mxu0
        %v428 = vadd.f32 %v283, %v427
        %429 = vdwg.mxu0
        %v430 = vmul.f32 %v355, 0.5
        %v431 = vmul.f32 %v357, 0.5
        %v432 = vmul.f32 %v426, 0.5
        %v433 = vmul.f32 %v428, 0.5
        %v434 = vmul.f32 %v355, 0.70710677
        %v435 = vmul.f32 %v357, 0.70710677
        %v436 = vmul.f32 %v426, 0.70710677
        %v437 = vmul.f32 %v428, 0.70710677
        %v438 = vand.u32 2147483647, %v434
        %v439 = vand.u32 2147483647, %v435
        %v440 = vand.u32 2147483647, %v436
        %v441 = vand.u32 2147483647, %v437
        %v442 = vmul.f32 %v438, 0.3275911
        %v443 = vmul.f32 %v439, 0.3275911
        %v444 = vmul.f32 %v440, 0.3275911
        %v445 = vmul.f32 %v441, 0.3275911
        %v446 = vadd.f32 %v442, 1.0
        %v447 = vadd.f32 %v443, 1.0
        %v448 = vadd.f32 %v444, 1.0
        %v449 = vadd.f32 %v445, 1.0
        %v450 = vrcp.pop %v446
        %v451 = vrcp.pop %v447
        %v452 = vrcp.pop %v448
        %v453 = vrcp.pop %v449
        %v454 = vmul.f32 %v446, %v450
        %v455 = vmul.f32 %v447, %v451
        %v456 = vmul.f32 %v448, %v452
        %v457 = vmul.f32 %v449, %v453
        %v458 = vsub.f32 2.0, %v454
        %v459 = vsub.f32 2.0, %v455
        %v460 = vsub.f32 2.0, %v456
        %v461 = vsub.f32 2.0, %v457
        %v462 = vmul.f32 %v450, %v458
        %v463 = vmul.f32 %v451, %v459
        %v464 = vmul.f32 %v452, %v460
        %v465 = vmul.f32 %v453, %v461
        %v466 = vmul.f32 %v462, 1.0614054
        %v467 = vmul.f32 %v463, 1.0614054
        %v468 = vmul.f32 %v464, 1.0614054
        %v469 = vmul.f32 %v465, 1.0614054
        %v470 = vadd.f32 %v466, -1.4531521
        %v471 = vadd.f32 %v467, -1.4531521
        %v472 = vadd.f32 %v468, -1.4531521
        %v473 = vadd.f32 %v469, -1.4531521
        %v474 = vmul.f32 %v470, %v462
        %v475 = vmul.f32 %v471, %v463
        %v476 = vmul.f32 %v472, %v464
        %v477 = vmul.f32 %v473, %v465
        %v478 = vadd.f32 %v474, 1.4214138
        %v479 = vadd.f32 %v475, 1.4214138
        %v480 = vadd.f32 %v476, 1.4214138
        %v481 = vadd.f32 %v477, 1.4214138
        %v482 = vmul.f32 %v478, %v462
        %v483 = vmul.f32 %v479, %v463
        %v484 = vmul.f32 %v480, %v464
        %v485 = vmul.f32 %v481, %v465
        %v486 = vadd.f32 %v482, -0.28449672
        %v487 = vadd.f32 %v483, -0.28449672
        %v488 = vadd.f32 %v484, -0.28449672
        %v489 = vadd.f32 %v485, -0.28449672
        %v490 = vmul.f32 %v486, %v462
        %v491 = vmul.f32 %v487, %v463
        %v492 = vmul.f32 %v488, %v464
        %v493 = vmul.f32 %v489, %v465
        %v494 = vadd.f32 %v490, 0.2548296
        %v495 = vadd.f32 %v491, 0.2548296
        %v496 = vadd.f32 %v492, 0.2548296
        %v497 = vadd.f32 %v493, 0.2548296
        %v498 = vmul.f32 %v494, %v462
        %v499 = vmul.f32 %v495, %v463
        %v500 = vmul.f32 %v496, %v464
        %v501 = vmul.f32 %v497, %v465
        %v502 = vsub.f32 0.0, %v438
        %v503 = vsub.f32 0.0, %v439
        %v504 = vsub.f32 0.0, %v440
        %v505 = vsub.f32 0.0, %v441
        %v506 = vmul.f32 %v502, %v438
        %v507 = vmul.f32 %v503, %v439
        %v508 = vmul.f32 %v504, %v440
        %v509 = vmul.f32 %v505, %v441
        %v510 = vmul.f32 %v506, 1.442695
        %v511 = vpow.pop %v510
        %v512 = vmul.f32 %v507, 1.442695
        %v513 = vpow.pop %v512
        %v514 = vmul.f32 %v508, 1.442695
        %v515 = vpow.pop %v514
        %v516 = vmul.f32 %v509, 1.442695
        %v517 = vpow.pop %v516
        %v518 = vmul.f32 %v498, %v511
        %v519 = vmul.f32 %v499, %v513
        %v520 = vmul.f32 %v500, %v515
        %v521 = vmul.f32 %v501, %v517
        %v522 = vsub.f32 1.0, %v518
        %v523 = vsub.f32 1.0, %v519
        %v524 = vsub.f32 1.0, %v520
        %v525 = vsub.f32 1.0, %v521
        %vm526 = vcmp.ge.f32.partialorder %v434, 0.0
        %vm527 = vcmp.ge.f32.partialorder %v435, 0.0
        %vm528 = vcmp.ge.f32.partialorder %v436, 0.0
        %vm529 = vcmp.ge.f32.partialorder %v437, 0.0
        %v530 = vsub.f32 0.0, %v522
        %v531 = vsub.f32 0.0, %v523
        %v532 = vsub.f32 0.0, %v524
        %v533 = vsub.f32 0.0, %v525
        %v534 = vsel %vm526, %v522, %v530
        %v535 = vsel %vm527, %v523, %v531
        %v536 = vsel %vm528, %v524, %v532
        %v537 = vsel %vm529, %v525, %v533
        %v538 = vadd.f32 %v534, 1.0
        %v539 = vadd.f32 %v535, 1.0
        %v540 = vadd.f32 %v536, 1.0
        %v541 = vadd.f32 %v537, 1.0
        %v542 = vmul.f32 %v430, %v538
        %v543 = vmul.f32 %v431, %v539
        %v544 = vmul.f32 %v432, %v540
        %v545 = vmul.f32 %v433, %v541
        %546 = vst [vmem:[%s200] sm:$0xff] %v542
        %547 = vst [vmem:[%s200 + $0x8] sm:$0xff] %v543
        %548 = vst [vmem:[%s200 + $0x10] sm:$0xff] %v544
        %549 = vst [vmem:[%s200 + $0x18] sm:$0xff] %v545
        %s550 = sand.u32 %s97, 1
        %s551 = scalar_lea.sflag [#allocation4], %s550
        %s552 = sand.u32 %s97, 1
        %s553 = smul.addr %s552, 32
        %s554 = scalar_lea.vmem [#allocation7], %s553
        // Predicated region
        $region41: #{tpu_custom_call.1} parent=31 // pred_check
          %p555 = pneg %p107
        $region42: #{tpu_custom_call.1} parent=31 // pred_check_branch
          %557 = sbr.rel (%p555) target = $region44
        $region43: #{tpu_custom_call.1} parent=31 // pred_region
          %s559 = ssub.s32 512, 512
          %560 = vsyncadd %s551, %s559
          %s561 = smul.addr %s21, 4
          %s562 = smul.addr %s561, 128
          %s563 = scalar_lea.hbm %s3, %s562
          %s565 = sshll.u32 %s554, 4
          %s566 = int_to_ptr.vmem [resolvable:$true] %s565
          %568 = dma.vmem_to_hbm [thread:$0]  %s566, 512, %s563, %s551
        $region44: #{tpu_custom_call.1} parent=31 // pred_fallthru
          _
      $region32: #{tpu_custom_call.1} parent=5 // pred_fallthru
        _
      %p569 = scmp.le.s32.totalorder 2, %s16
      // Predicated region
      $region45: #{tpu_custom_call.1} parent=5 // pred_check
        %p570 = pneg %p569
      $region46: #{tpu_custom_call.1} parent=5 // pred_check_branch
        %572 = sbr.rel (%p570) target = $region48
      $region47: #{tpu_custom_call.1} parent=5 // pred_region
        %s573 = ssub.s32 %s16, 2
        // Predicated region
        $region49: #{tpu_custom_call.1} parent=47 // pred_check
          %p574 = pneg %p113
        $region50: #{tpu_custom_call.1} parent=47 // pred_check_branch
          %576 = sbr.rel (%p574) target = $region52
        $region51: #{tpu_custom_call.1} parent=47 // pred_region
          %s577 = sand.u32 %s98, 1
          %s578 = scalar_lea.sflag [#allocation4], %s577
          %s579 = sand.u32 %s98, 1
          %s580 = smul.addr %s579, 32
          %s581 = scalar_lea.vmem [#allocation7], %s580
          %582 = dma.done %s578, 512
        $region52: #{tpu_custom_call.1} parent=47 // pred_fallthru
          _
      $region48: #{tpu_custom_call.1} parent=5 // pred_fallthru
        _
    $region6: #{tpu_custom_call.1} parent=1 // loop_footer
      %s20 = sadd.s32 1, %s16
    $region7: #{tpu_custom_call.1} parent=1 // loop_footer_branch
      %15 = sbr.rel target = $region3
    $region8: #{tpu_custom_call.1} parent=1 // loop_exit
      _
    %583 = vsyncpa [#allocation3], 1
    %s584 = scalar_lea.sflag [#allocation3], 1
    %585 = vsyncpa %s584, 1
    %586 = vsyncpa [#allocation6], 1
    %587 = vsyncpa [#allocation4], 1
    %s588 = scalar_lea.sflag [#allocation4], 1
    %589 = vsyncpa %s588, 1

// kernel: tpu_custom_call.1
$region0: #{tpu_custom_call.1}
  #allocation0 [shape = 'u32[]', space=smem, size = 0x4, offset = 0x4, fixed_abs, tag = 'smem constant byte address 0x4 - core index']
  #allocation1 [shape = 'u32[144,128]{1,0:T(1,128)}', space=vmem, size = 0x12000, scoped, tag = 'internal scratch']
  %s0 = inlined_call_operand.hbm [shape: f32[16,128], index: 0, kind: input, shape index: {}]
  %s1 = inlined_call_operand.hbm [shape: f32[128,512], index: 1, kind: input, shape index: {}]
  %s2 = inlined_call_operand.vmem [shape: f32[1,512], index: 2, kind: input, shape index: {}]
  %s3 = inlined_call_operand.hbm [shape: f32[16,512], index: 3, kind: output, shape index: {}]
  %s4 = sld [smem:[#allocation0]]
  $region53: #{tpu_custom_call.1} parent=0
    _
  %s6 = ssub.s32 1, %s4
  %s7 = scalar_select 0, %s6, %s4
  $region1: #{tpu_custom_call.1} parent=0
    #allocation2 [shape = 'u8[8192]{0}', space=vmem, size = 0x2000, scoped, tag = 'input window, operand 0']
    #allocation3 [shape = 's32[2]{0}', space=sflag, size = 0x8, scoped, tag = 'scoped memory for tpu_custom_call.1']
    #allocation4 [shape = 's32[2]{0}', space=sflag, size = 0x8, scoped, tag = 'scoped memory for tpu_custom_call.1']
    #allocation5 [shape = 'u8[262144]{0}', space=vmem, size = 0x40000, scoped, tag = 'input window, operand 1, single buffered']
    #allocation6 [shape = 's32[1]{0}', space=sflag, size = 0x4, scoped, tag = 'scoped memory for tpu_custom_call.1']
    #allocation7 [shape = 'u8[32768]{0}', space=vmem, size = 0x8000, scoped, tag = 'output window, operand 0']
    %8 = vsyncpa [#allocation3], 0
    %s9 = scalar_lea.sflag [#allocation3], 1
    %10 = vsyncpa %s9, 0
    %11 = vsyncpa [#allocation6], 0
    %12 = vsyncpa [#allocation4], 0
    %s13 = scalar_lea.sflag [#allocation4], 1
    %14 = vsyncpa %s13, 0
    loop: start=0, step=1, limit=4
    $region2: #{tpu_custom_call.1} parent=1 // loop_pre_header
      _
    $region3: #{tpu_custom_call.1} parent=1 // loop_header
      %s16 = sphi 0, %s20
      %p17 = scmp.ge.s32.totalorder %s16, 4
      %s26 = sphi 0, %s28
      %s29 = sphi 0, %s26
      %s30 = sphi 0, %s29
      %s46 = sphi 0, %s30
      %s50 = sphi 0, %s50
      %s52 = sphi 0, %s50
      %s53 = sphi 0, %s52
      %s67 = sphi 0, %s53
      %s71 = sphi 0, %s71
      %s73 = sphi 0, %s71
      %s74 = sphi 0, %s73
      %s88 = sphi 0, %s74
      %s94 = sphi 0, %s96
      %s97 = sphi 0, %s94
      %s98 = sphi 0, %s97
      %s114 = sphi 0, %s98
    $region4: #{tpu_custom_call.1} parent=1 // loop_header_branch
      %19 = sbr.rel (%p17) target = $region8
    $region5: #{tpu_custom_call.1} parent=1 // loop_body
      %s21 = ssub.s32 %s16, 1
      %s22 = ssub.s32 %s16, 2
      %s23 = sadd.s32 %s16, 1
      %s24 = ssub.s32 %s16, %s23
      %p25 = scmp.eq.s32.totalorder %s24, 0
      %s27 = sadd.s32 %s26, 1
      %s28 = scalar_select %p25, %s26, %s27
      %p31 = pneg %p25
      %p32 = scmp.eq.s32.totalorder %s16, 1
      %p33 = por %p31, %p32
      %p34 = scmp.ne.s32.totalorder %s26, %s29
      %p35 = scmp.eq.s32.totalorder %s16, 0
      %p36 = por %p34, %p35
      %p37 = scmp.ne.s32.totalorder %s26, %s29
      %p38 = scmp.eq.s32.totalorder %s21, 1
      %p39 = por %p37, %p38
      %p40 = scmp.ne.s32.totalorder %s29, %s30
      %p41 = scmp.eq.s32.totalorder %s21, 0
      %p42 = por %p40, %p41
      %p43 = scmp.ne.s32.totalorder %s29, %s30
      %p44 = scmp.eq.s32.totalorder %s22, 1
      %p45 = por %p43, %p44
      %p47 = scmp.ne.s32.totalorder %s30, %s46
      %p48 = scmp.eq.s32.totalorder %s22, 0
      %p49 = por %p47, %p48
      %s51 = sadd.s32 %s50, 1
      %p54 = scmp.eq.s32.totalorder %s16, 1
      %p55 = scmp.ne.s32.totalorder %s50, %s52
      %p56 = scmp.eq.s32.totalorder %s16, 0
      %p57 = por %p55, %p56
      %p58 = scmp.ne.s32.totalorder %s50, %s52
      %p59 = scmp.eq.s32.totalorder %s21, 1
      %p60 = por %p58, %p59
      %p61 = scmp.ne.s32.totalorder %s52, %s53
      %p62 = scmp.eq.s32.totalorder %s21, 0
      %p63 = por %p61, %p62
      %p64 = scmp.ne.s32.totalorder %s52, %s53
      %p65 = scmp.eq.s32.totalorder %s22, 1
      %p66 = por %p64, %p65
      %p68 = scmp.ne.s32.totalorder %s53, %s67
      %p69 = scmp.eq.s32.totalorder %s22, 0
      %p70 = por %p68, %p69
      %s72 = sadd.s32 %s71, 1
      %p75 = scmp.eq.s32.totalorder %s16, 1
      %p76 = scmp.ne.s32.totalorder %s71, %s73
      %p77 = scmp.eq.s32.totalorder %s16, 0
      %p78 = por %p76, %p77
      %p79 = scmp.ne.s32.totalorder %s71, %s73
      %p80 = scmp.eq.s32.totalorder %s21, 1
      %p81 = por %p79, %p80
      %p82 = scmp.ne.s32.totalorder %s73, %s74
      %p83 = scmp.eq.s32.totalorder %s21, 0
      %p84 = por %p82, %p83
      %p85 = scmp.ne.s32.totalorder %s73, %s74
      %p86 = scmp.eq.s32.totalorder %s22, 1
      %p87 = por %p85, %p86
      %p89 = scmp.ne.s32.totalorder %s74, %s88
      %p90 = scmp.eq.s32.totalorder %s22, 0
      %p91 = por %p89, %p90
      %s92 = ssub.s32 %s16, %s23
      %p93 = scmp.eq.s32.totalorder %s92, 0
      %s95 = sadd.s32 %s94, 1
      %s96 = scalar_select %p93, %s94, %s95
      %p99 = pneg %p93
      %p100 = scmp.eq.s32.totalorder %s16, 1
      %p101 = por %p99, %p100
      %p102 = scmp.ne.s32.totalorder %s94, %s97
      %p103 = scmp.eq.s32.totalorder %s16, 0
      %p104 = por %p102, %p103
      %p105 = scmp.ne.s32.totalorder %s94, %s97
      %p106 = scmp.eq.s32.totalorder %s21, 1
      %p107 = por %p105, %p106
      %p108 = scmp.ne.s32.totalorder %s97, %s98
      %p109 = scmp.eq.s32.totalorder %s21, 0
      %p110 = por %p108, %p109
      %p111 = scmp.ne.s32.totalorder %s97, %s98
      %p112 = scmp.eq.s32.totalorder %s22, 1
      %p113 = por %p111, %p112
      %p115 = scmp.ne.s32.totalorder %s98, %s114
      %p116 = scmp.eq.s32.totalorder %s22, 0
      %p117 = por %p115, %p116
      %p118 = scmp.le.s32.totalorder 1, %s16
      %p119 = scmp.lt.s32.totalorder %s16, 3
      %p120 = pnand %p118, %p119
      %p121 = pneg %p120
      // Predicated region
      $region9: #{tpu_custom_call.1} parent=5 // pred_check
        _
      $region10: #{tpu_custom_call.1} parent=5 // pred_check_branch
        %123 = sbr.rel (%p120) target = $region12
      $region11: #{tpu_custom_call.1} parent=5 // pred_region
        %s124 = ssub.s32 %s16, 1
        // Predicated region
        $region13: #{tpu_custom_call.1} parent=11 // pred_check
          %p125 = pneg %p63
        $region14: #{tpu_custom_call.1} parent=11 // pred_check_branch
          %127 = sbr.rel (%p125) target = $region16
        $region15: #{tpu_custom_call.1} parent=11 // pred_region
          %s129 = ssub.s32 8192, 8192
          %130 = vsyncadd [#allocation6], %s129
          %s131 = sshll.u32 [#allocation5], 4
          %s132 = int_to_ptr.vmem [resolvable:$true] %s131
          %137 = dma.hbm_to_vmem [thread:$0]  %s1, 8192, %s132, [#allocation6], 512, 512, 32
        $region16: #{tpu_custom_call.1} parent=11 // pred_fallthru
          _
        // Predicated region
        $region17: #{tpu_custom_call.1} parent=11 // pred_check
          %p138 = pneg %p84
        $region18: #{tpu_custom_call.1} parent=11 // pred_check_branch
          %140 = sbr.rel (%p138) target = $region20
        $region19: #{tpu_custom_call.1} parent=11 // pred_region
          _
        $region20: #{tpu_custom_call.1} parent=11 // pred_fallthru
          _
      $region12: #{tpu_custom_call.1} parent=5 // pred_fallthru
        _
      %p141 = scmp.lt.s32.totalorder %s16, 2
      // Predicated region
      $region21: #{tpu_custom_call.1} parent=5 // pred_check
        %p142 = pneg %p141
      $region22: #{tpu_custom_call.1} parent=5 // pred_check_branch
        %144 = sbr.rel (%p142) target = $region24
      $region23: #{tpu_custom_call.1} parent=5 // pred_region
        // Predicated region
        $region25: #{tpu_custom_call.1} parent=23 // pred_check
          %p145 = pneg %p36
        $region26: #{tpu_custom_call.1} parent=23 // pred_check_branch
          %147 = sbr.rel (%p145) target = $region28
        $region27: #{tpu_custom_call.1} parent=23 // pred_region
          %s148 = sand.u32 %s26, 1
          %s149 = scalar_lea.sflag [#allocation3], %s148
          %s150 = sand.u32 %s26, 1
          %s151 = smul.addr %s150, 8
          %s152 = scalar_lea.vmem [#allocation2], %s151
          %s154 = ssub.s32 128, 128
          %155 = vsyncadd %s149, %s154
          %s156 = smul.addr %s16, 128
          %s157 = scalar_lea.hbm %s0, %s156
          %s159 = sshll.u32 %s152, 4
          %s160 = int_to_ptr.vmem [resolvable:$true] %s159
          %162 = dma.hbm_to_vmem [thread:$0]  %s157, 128, %s160, %s149
        $region28: #{tpu_custom_call.1} parent=23 // pred_fallthru
          _
      $region24: #{tpu_custom_call.1} parent=5 // pred_fallthru
        _
      %p163 = scmp.le.s32.totalorder 1, %s16
      %p164 = scmp.lt.s32.totalorder %s16, 3
      %p165 = pnand %p163, %p164
      %p166 = pneg %p165
      // Predicated region
      $region29: #{tpu_custom_call.1} parent=5 // pred_check
        _
      $region30: #{tpu_custom_call.1} parent=5 // pred_check_branch
        %168 = sbr.rel (%p165) target = $region32
      $region31: #{tpu_custom_call.1} parent=5 // pred_region
        %s169 = ssub.s32 %s16, 1
        %s170 = sand.u32 %s29, 1
        %s171 = scalar_lea.sflag [#allocation3], %s170
        %s172 = sand.u32 %s29, 1
        %s173 = smul.addr %s172, 8
        %s174 = scalar_lea.vmem [#allocation2], %s173
        // Predicated region
        $region33: #{tpu_custom_call.1} parent=31 // pred_check
          %p175 = pneg %p42
        $region34: #{tpu_custom_call.1} parent=31 // pred_check_branch
          %177 = sbr.rel (%p175) target = $region36
        $region35: #{tpu_custom_call.1} parent=31 // pred_region
          %178 = dma.done %s171, 128
        $region36: #{tpu_custom_call.1} parent=31 // pred_fallthru
          _
        // Predicated region
        $region37: #{tpu_custom_call.1} parent=31 // pred_check
          %p179 = pneg %p63
        $region38: #{tpu_custom_call.1} parent=31 // pred_check_branch
          %181 = sbr.rel (%p179) target = $region40
        $region39: #{tpu_custom_call.1} parent=31 // pred_region
          %182 = dma.done [#allocation6], 8192
        $region40: #{tpu_custom_call.1} parent=31 // pred_fallthru
          _
        %s183 = sand.u32 %s29, 1
        %s184 = scalar_lea.sflag [#allocation3], %s183
        %s185 = sand.u32 %s29, 1
        %s186 = smul.addr %s185, 8
        %s187 = scalar_lea.vmem [#allocation2], %s186
        %p188 = pneg %p42
        %p189 = pneg %p39
        %p190 = pneg %p63
        %p191 = pneg %p60
        %p192 = pneg %p84
        %p193 = pneg %p81
        %p194 = pneg %p110
        %p195 = pneg %p107
        %s196 = sand.u32 %s97, 1
        %s197 = scalar_lea.sflag [#allocation4], %s196
        %s198 = sand.u32 %s97, 1
        %s199 = smul.addr %s198, 32
        %s200 = scalar_lea.vmem [#allocation7], %s199
        %v201 = vld [vmem:[%s174] sm:$0xff]
        %v202 = vld [vmem:[#allocation5] sm:$0xff]
        %v203 = vld [vmem:[#allocation5 + $0x8] sm:$0xff]
        %v204 = vld [vmem:[#allocation5 + $0x10] sm:$0xff]
        %v205 = vld [vmem:[#allocation5 + $0x18] sm:$0xff]
        %v206 = vld [vmem:[#allocation5 + $0x20] sm:$0xff]
        %v207 = vld [vmem:[#allocation5 + $0x28] sm:$0xff]
        %v208 = vld [vmem:[#allocation5 + $0x30] sm:$0xff]
        %v209 = vld [vmem:[#allocation5 + $0x38] sm:$0xff]
        %v210 = vld [vmem:[#allocation5 + $0x40] sm:$0xff]
        %v211 = vld [vmem:[#allocation5 + $0x48] sm:$0xff]
        %v212 = vld [vmem:[#allocation5 + $0x50] sm:$0xff]
        %v213 = vld [vmem:[#allocation5 + $0x58] sm:$0xff]
        %v214 = vld [vmem:[#allocation5 + $0x60] sm:$0xff]
        %v215 = vld [vmem:[#allocation5 + $0x68] sm:$0xff]
        %v216 = vld [vmem:[#allocation5 + $0x70] sm:$0xff]
        %v217 = vld [vmem:[#allocation5 + $0x78] sm:$0xff]
        %v218 = vld [vmem:[#allocation5 + $0x80] sm:$0xff]
        %v219 = vld [vmem:[#allocation5 + $0x88] sm:$0xff]
        %v220 = vld [vmem:[#allocation5 + $0x90] sm:$0xff]
        %v221 = vld [vmem:[#allocation5 + $0x98] sm:$0xff]
        %v222 = vld [vmem:[#allocation5 + $0xa0] sm:$0xff]
        %v223 = vld [vmem:[#allocation5 + $0xa8] sm:$0xff]
        %v224 = vld [vmem:[#allocation5 + $0xb0] sm:$0xff]
        %v225 = vld [vmem:[#allocation5 + $0xb8] sm:$0xff]
        %v226 = vld [vmem:[#allocation5 + $0xc0] sm:$0xff]
        %v227 = vld [vmem:[#allocation5 + $0xc8] sm:$0xff]
        %v228 = vld [vmem:[#allocation5 + $0xd0] sm:$0xff]
        %v229 = vld [vmem:[#allocation5 + $0xd8] sm:$0xff]
        %v230 = vld [vmem:[#allocation5 + $0xe0] sm:$0xff]
        %v231 = vld [vmem:[#allocation5 + $0xe8] sm:$0xff]
        %v232 = vld [vmem:[#allocation5 + $0xf0] sm:$0xff]
        %v233 = vld [vmem:[#allocation5 + $0xf8] sm:$0xff]
        %v234 = vld [vmem:[#allocation5 + $0x100] sm:$0xff]
        %v235 = vld [vmem:[#allocation5 + $0x108] sm:$0xff]
        %v236 = vld [vmem:[#allocation5 + $0x110] sm:$0xff]
        %v237 = vld [vmem:[#allocation5 + $0x118] sm:$0xff]
        %v238 = vld [vmem:[#allocation5 + $0x120] sm:$0xff]
        %v239 = vld [vmem:[#allocation5 + $0x128] sm:$0xff]
        %v240 = vld [vmem:[#allocation5 + $0x130] sm:$0xff]
        %v241 = vld [vmem:[#allocation5 + $0x138] sm:$0xff]
        %v242 = vld [vmem:[#allocation5 + $0x140] sm:$0xff]
        %v243 = vld [vmem:[#allocation5 + $0x148] sm:$0xff]
        %v244 = vld [vmem:[#allocation5 + $0x150] sm:$0xff]
        %v245 = vld [vmem:[#allocation5 + $0x158] sm:$0xff]
        %v246 = vld [vmem:[#allocation5 + $0x160] sm:$0xff]
        %v247 = vld [vmem:[#allocation5 + $0x168] sm:$0xff]
        %v248 = vld [vmem:[#allocation5 + $0x170] sm:$0xff]
        %v249 = vld [vmem:[#allocation5 + $0x178] sm:$0xff]
        %v250 = vld [vmem:[#allocation5 + $0x180] sm:$0xff]
        %v251 = vld [vmem:[#allocation5 + $0x188] sm:$0xff]
        %v252 = vld [vmem:[#allocation5 + $0x190] sm:$0xff]
        %v253 = vld [vmem:[#allocation5 + $0x198] sm:$0xff]
        %v254 = vld [vmem:[#allocation5 + $0x1a0] sm:$0xff]
        %v255 = vld [vmem:[#allocation5 + $0x1a8] sm:$0xff]
        %v256 = vld [vmem:[#allocation5 + $0x1b0] sm:$0xff]
        %v257 = vld [vmem:[#allocation5 + $0x1b8] sm:$0xff]
        %v258 = vld [vmem:[#allocation5 + $0x1c0] sm:$0xff]
        %v259 = vld [vmem:[#allocation5 + $0x1c8] sm:$0xff]
        %v260 = vld [vmem:[#allocation5 + $0x1d0] sm:$0xff]
        %v261 = vld [vmem:[#allocation5 + $0x1d8] sm:$0xff]
        %v262 = vld [vmem:[#allocation5 + $0x1e0] sm:$0xff]
        %v263 = vld [vmem:[#allocation5 + $0x1e8] sm:$0xff]
        %v264 = vld [vmem:[#allocation5 + $0x1f0] sm:$0xff]
        %v265 = vld [vmem:[#allocation5 + $0x1f8] sm:$0xff]
        %v266 = vld [vmem:[%s2] sm:$0xf]
        %v268 = vlaneseq
        %v269 = vshrl.u32 %v268, 7
        %v270 = vsub.s32 0, %v269
        %v271 = vrot.slane %v266, %v270
        %v272 = vlaneseq
        %v273 = vshrl.u32 %v272, 7
        %v274 = vsub.s32 1, %v273
        %v275 = vrot.slane %v266, %v274
        %v276 = vlaneseq
        %v277 = vshrl.u32 %v276, 7
        %v278 = vsub.s32 2, %v277
        %v279 = vrot.slane %v266, %v278
        %v280 = vlaneseq
        %v281 = vshrl.u32 %v280, 7
        %v282 = vsub.s32 3, %v281
        %v283 = vrot.slane %v266, %v282
        %288 = vmatprep.subr.mxu0 %v203
        %289 = vmatpush1.msra.mxu0 %v202
        %290 = vmatprep.subr.mxu0 %v207
        %291 = vmatpush1.msra.mxu0 %v206
        %292 = vmatprep.subr.mxu0 %v211
        %293 = vmatpush1.msra.mxu0 %v210
        %294 = vmatprep.subr.mxu0 %v215
        %295 = vmatpush1.msra.mxu0 %v214
        %296 = vmatprep.subr.mxu0 %v219
        %297 = vmatpush1.msra.mxu0 %v218
        %298 = vmatprep.subr.mxu0 %v223
        %299 = vmatpush1.msra.mxu0 %v222
        %300 = vmatprep.subr.mxu0 %v227
        %301 = vmatpush1.msra.mxu0 %v226
        %302 = vmatprep.subr.mxu0 %v231
        %303 = vmatpush1.msra.mxu0 %v230
        %304 = vmatprep.subr.mxu0 %v235
        %305 = vmatpush1.msra.mxu0 %v234
        %306 = vmatprep.subr.mxu0 %v239
        %307 = vmatpush1.msra.mxu0 %v238
        %308 = vmatprep.subr.mxu0 %v243
        %309 = vmatpush1.msra.mxu0 %v242
        %310 = vmatprep.subr.mxu0 %v247
        %311 = vmatpush1.msra.mxu0 %v246
        %312 = vmatprep.subr.mxu0 %v251
        %313 = vmatpush1.msra.mxu0 %v250
        %314 = vmatprep.subr.mxu0 %v255
        %315 = vmatpush1.msra.mxu0 %v254
        %316 = vmatprep.subr.mxu0 %v259
        %317 = vmatpush1.msra.mxu0 %v258
        %318 = vmatprep.subr.mxu0 %v263
        %319 = vmatpush1.msra.mxu0 %v262
        %320 = vmatprep.subr.mxu0 0.0
        %321 = vmatpush1.msra.mxu0 0.0
        %322 = vmatprep.subr.mxu0 0.0
        %323 = vmatpush1.msra.mxu0 0.0
        %324 = vmatprep.subr.mxu0 0.0
        %325 = vmatpush1.msra.mxu0 0.0
        %326 = vmatprep.subr.mxu0 0.0
        %327 = vmatpush1.msra.mxu0 0.0
        %328 = vmatprep.subr.mxu0 0.0
        %329 = vmatpush1.msra.mxu0 0.0
        %330 = vmatprep.subr.mxu0 0.0
        %331 = vmatpush1.msra.mxu0 0.0
        %332 = vmatprep.subr.mxu0 0.0
        %333 = vmatpush1.msra.mxu0 0.0
        %334 = vmatprep.subr.mxu0 0.0
        %335 = vmatpush1.msra.mxu0 0.0
        %336 = vmatprep.subr.mxu0 0.0
        %337 = vmatpush1.msra.mxu0 0.0
        %338 = vmatprep.subr.mxu0 0.0
        %339 = vmatpush1.msra.mxu0 0.0
        %340 = vmatprep.subr.mxu0 0.0
        %341 = vmatpush1.msra.mxu0 0.0
        %342 = vmatprep.subr.mxu0 0.0
        %343 = vmatpush1.msra.mxu0 0.0
        %344 = vmatprep.subr.mxu0 0.0
        %345 = vmatpush1.msra.mxu0 0.0
        %346 = vmatprep.subr.mxu0 0.0
        %347 = vmatpush1.msra.mxu0 0.0
        %348 = vmatprep.subr.mxu0 0.0
        %349 = vmatpush1.msra.mxu0 0.0
        %350 = vmatprep.subr.mxu0 0.0
        %351 = vmatpush1.msra.mxu0 0.0
        %352 = vmatprep.mubr.f32.mxu0 0.0
        %353 = vmatmul.mubr.f32.gmra.mrb[0].mxu0 %v201
        %v354 = vpop.f32.mrb[0].mxu0
        %v355 = vadd.f32 %v271, %v354
        %v356 = vpop.f32.mrb[0].mxu0
        %v357 = vadd.f32 %v275, %v356
        %358 = vdwg.mxu0
        %359 = vmatprep.subr.mxu0 %v205
        %360 = vmatpush1.msra.mxu0 %v204
        %361 = vmatprep.subr.mxu0 %v209
        %362 = vmatpush1.msra.mxu0 %v208
        %363 = vmatprep.subr.mxu0 %v213
        %364 = vmatpush1.msra.mxu0 %v212
        %365 = vmatprep.subr.mxu0 %v217
        %366 = vmatpush1.msra.mxu0 %v216
        %367 = vmatprep.subr.mxu0 %v221
        %368 = vmatpush1.msra.mxu0 %v220
        %369 = vmatprep.subr.mxu0 %v225
        %370 = vmatpush1.msra.mxu0 %v224
        %371 = vmatprep.subr.mxu0 %v229
        %372 = vmatpush1.msra.mxu0 %v228
        %373 = vmatprep.subr.mxu0 %v233
        %374 = vmatpush1.msra.mxu0 %v232
        %375 = vmatprep.subr.mxu0 %v237
        %376 = vmatpush1.msra.mxu0 %v236
        %377 = vmatprep.subr.mxu0 %v241
        %378 = vmatpush1.msra.mxu0 %v240
        %379 = vmatprep.subr.mxu0 %v245
        %380 = vmatpush1.msra.mxu0 %v244
        %381 = vmatprep.subr.mxu0 %v249
        %382 = vmatpush1.msra.mxu0 %v248
        %383 = vmatprep.subr.mxu0 %v253
        %384 = vmatpush1.msra.mxu0 %v252
        %385 = vmatprep.subr.mxu0 %v257
        %386 = vmatpush1.msra.mxu0 %v256
        %387 = vmatprep.subr.mxu0 %v261
        %388 = vmatpush1.msra.mxu0 %v260
        %389 = vmatprep.subr.mxu0 %v265
        %390 = vmatpush1.msra.mxu0 %v264
        %391 = vmatprep.subr.mxu0 0.0
        %392 = vmatpush1.msra.mxu0 0.0
        %393 = vmatprep.subr.mxu0 0.0
        %394 = vmatpush1.msra.mxu0 0.0
        %395 = vmatprep.subr.mxu0 0.0
        %396 = vmatpush1.msra.mxu0 0.0
        %397 = vmatprep.subr.mxu0 0.0
        %398 = vmatpush1.msra.mxu0 0.0
        %399 = vmatprep.subr.mxu0 0.0
        %400 = vmatpush1.msra.mxu0 0.0
        %401 = vmatprep.subr.mxu0 0.0
        %402 = vmatpush1.msra.mxu0 0.0
        %403 = vmatprep.subr.mxu0 0.0
        %404 = vmatpush1.msra.mxu0 0.0
        %405 = vmatprep.subr.mxu0 0.0
        %406 = vmatpush1.msra.mxu0 0.0
        %407 = vmatprep.subr.mxu0 0.0
        %408 = vmatpush1.msra.mxu0 0.0
        %409 = vmatprep.subr.mxu0 0.0
        %410 = vmatpush1.msra.mxu0 0.0
        %411 = vmatprep.subr.mxu0 0.0
        %412 = vmatpush1.msra.mxu0 0.0
        %413 = vmatprep.subr.mxu0 0.0
        %414 = vmatpush1.msra.mxu0 0.0
        %415 = vmatprep.subr.mxu0 0.0
        %416 = vmatpush1.msra.mxu0 0.0
        %417 = vmatprep.subr.mxu0 0.0
        %418 = vmatpush1.msra.mxu0 0.0
        %419 = vmatprep.subr.mxu0 0.0
        %420 = vmatpush1.msra.mxu0 0.0
        %421 = vmatprep.subr.mxu0 0.0
        %422 = vmatpush1.msra.mxu0 0.0
        %423 = vmatprep.mubr.f32.mxu0 0.0
        %424 = vmatmul.mubr.f32.gmra.mrb[0].mxu0 %v201
        %v425 = vpop.f32.mrb[0].mxu0
        %v426 = vadd.f32 %v279, %v425
        %v427 = vpop.f32.mrb[0].mxu0
        %v428 = vadd.f32 %v283, %v427
        %429 = vdwg.mxu0
        %v430 = vmul.f32 %v355, 0.5
        %v431 = vmul.f32 %v357, 0.5
        %v432 = vmul.f32 %v426, 0.5
        %v433 = vmul.f32 %v428, 0.5
        %v434 = vmul.f32 %v355, 0.70710677
        %v435 = vmul.f32 %v357, 0.70710677
        %v436 = vmul.f32 %v426, 0.70710677
        %v437 = vmul.f32 %v428, 0.70710677
        %v438 = vand.u32 2147483647, %v434
        %v439 = vand.u32 2147483647, %v435
        %v440 = vand.u32 2147483647, %v436
        %v441 = vand.u32 2147483647, %v437
        %v442 = vmul.f32 %v438, 0.3275911
        %v443 = vmul.f32 %v439, 0.3275911
        %v444 = vmul.f32 %v440, 0.3275911
        %v445 = vmul.f32 %v441, 0.3275911
        %v446 = vadd.f32 %v442, 1.0
        %v447 = vadd.f32 %v443, 1.0
        %v448 = vadd.f32 %v444, 1.0
        %v449 = vadd.f32 %v445, 1.0
        %v450 = vrcp.pop %v446
        %v451 = vrcp.pop %v447
        %v452 = vrcp.pop %v448
        %v453 = vrcp.pop %v449
        %v454 = vmul.f32 %v446, %v450
        %v455 = vmul.f32 %v447, %v451
        %v456 = vmul.f32 %v448, %v452
        %v457 = vmul.f32 %v449, %v453
        %v458 = vsub.f32 2.0, %v454
        %v459 = vsub.f32 2.0, %v455
        %v460 = vsub.f32 2.0, %v456
        %v461 = vsub.f32 2.0, %v457
        %v462 = vmul.f32 %v450, %v458
        %v463 = vmul.f32 %v451, %v459
        %v464 = vmul.f32 %v452, %v460
        %v465 = vmul.f32 %v453, %v461
        %v466 = vmul.f32 %v462, 1.0614054
        %v467 = vmul.f32 %v463, 1.0614054
        %v468 = vmul.f32 %v464, 1.0614054
        %v469 = vmul.f32 %v465, 1.0614054
        %v470 = vadd.f32 %v466, -1.4531521
        %v471 = vadd.f32 %v467, -1.4531521
        %v472 = vadd.f32 %v468, -1.4531521
        %v473 = vadd.f32 %v469, -1.4531521
        %v474 = vmul.f32 %v470, %v462
        %v475 = vmul.f32 %v471, %v463
        %v476 = vmul.f32 %v472, %v464
        %v477 = vmul.f32 %v473, %v465
        %v478 = vadd.f32 %v474, 1.4214138
        %v479 = vadd.f32 %v475, 1.4214138
        %v480 = vadd.f32 %v476, 1.4214138
        %v481 = vadd.f32 %v477, 1.4214138
        %v482 = vmul.f32 %v478, %v462
        %v483 = vmul.f32 %v479, %v463
        %v484 = vmul.f32 %v480, %v464
        %v485 = vmul.f32 %v481, %v465
        %v486 = vadd.f32 %v482, -0.28449672
        %v487 = vadd.f32 %v483, -0.28449672
        %v488 = vadd.f32 %v484, -0.28449672
        %v489 = vadd.f32 %v485, -0.28449672
        %v490 = vmul.f32 %v486, %v462
        %v491 = vmul.f32 %v487, %v463
        %v492 = vmul.f32 %v488, %v464
        %v493 = vmul.f32 %v489, %v465
        %v494 = vadd.f32 %v490, 0.2548296
        %v495 = vadd.f32 %v491, 0.2548296
        %v496 = vadd.f32 %v492, 0.2548296
        %v497 = vadd.f32 %v493, 0.2548296
        %v498 = vmul.f32 %v494, %v462
        %v499 = vmul.f32 %v495, %v463
        %v500 = vmul.f32 %v496, %v464
        %v501 = vmul.f32 %v497, %v465
        %v502 = vsub.f32 0.0, %v438
        %v503 = vsub.f32 0.0, %v439
        %v504 = vsub.f32 0.0, %v440
        %v505 = vsub.f32 0.0, %v441
        %v506 = vmul.f32 %v502, %v438
        %v507 = vmul.f32 %v503, %v439
        %v508 = vmul.f32 %v504, %v440
        %v509 = vmul.f32 %v505, %v441
        %v510 = vmul.f32 %v506, 1.442695
        %v511 = vpow.pop %v510
        %v512 = vmul.f32 %v507, 1.442695
        %v513 = vpow.pop %v512
        %v514 = vmul.f32 %v508, 1.442695
        %v515 = vpow.pop %v514
        %v516 = vmul.f32 %v509, 1.442695
        %v517 = vpow.pop %v516
        %v518 = vmul.f32 %v498, %v511
        %v519 = vmul.f32 %v499, %v513
        %v520 = vmul.f32 %v500, %v515
        %v521 = vmul.f32 %v501, %v517
        %v522 = vsub.f32 1.0, %v518
        %v523 = vsub.f32 1.0, %v519
        %v524 = vsub.f32 1.0, %v520
        %v525 = vsub.f32 1.0, %v521
        %vm526 = vcmp.ge.f32.partialorder %v434, 0.0
        %vm527 = vcmp.ge.f32.partialorder %v435, 0.0
        %vm528 = vcmp.ge.f32.partialorder %v436, 0.0
        %vm529 = vcmp.ge.f32.partialorder %v437, 0.0
        %v530 = vsub.f32 0.0, %v522
        %v531 = vsub.f32 0.0, %v523
        %v532 = vsub.f32 0.0, %v524
        %v533 = vsub.f32 0.0, %v525
        %v534 = vsel %vm526, %v522, %v530
        %v535 = vsel %vm527, %v523, %v531
        %v536 = vsel %vm528, %v524, %v532
        %v537 = vsel %vm529, %v525, %v533
        %v538 = vadd.f32 %v534, 1.0
        %v539 = vadd.f32 %v535, 1.0
        %v540 = vadd.f32 %v536, 1.0
        %v541 = vadd.f32 %v537, 1.0
        %v542 = vmul.f32 %v430, %v538
        %v543 = vmul.f32 %v431, %v539
        %v544 = vmul.f32 %v432, %v540
        %v545 = vmul.f32 %v433, %v541
        %546 = vst [vmem:[%s200] sm:$0xff] %v542
        %547 = vst [vmem:[%s200 + $0x8] sm:$0xff] %v543
        %548 = vst [vmem:[%s200 + $0x10] sm:$0xff] %v544
        %549 = vst [vmem:[%s200 + $0x18] sm:$0xff] %v545
        %s550 = sand.u32 %s97, 1
        %s551 = scalar_lea.sflag [#allocation4], %s550
        %s552 = sand.u32 %s97, 1
        %s553 = smul.addr %s552, 32
        %s554 = scalar_lea.vmem [#allocation7], %s553
        // Predicated region
        $region41: #{tpu_custom_call.1} parent=31 // pred_check
          %p555 = pneg %p107
        $region42: #{tpu_custom_call.1} parent=31 // pred_check_branch
          %557 = sbr.rel (%p555) target = $region44
        $region43: #{tpu_custom_call.1} parent=31 // pred_region
          %s559 = ssub.s32 512, 512
          %560 = vsyncadd %s551, %s559
          %s561 = smul.addr %s21, 4
          %s562 = smul.addr %s561, 128
          %s563 = scalar_lea.hbm %s3, %s562
          %s565 = sshll.u32 %s554, 4
          %s566 = int_to_ptr.vmem [resolvable:$true] %s565
          %568 = dma.vmem_to_hbm [thread:$0]  %s566, 512, %s563, %s551
        $region44: #{tpu_custom_call.1} parent=31 // pred_fallthru
          _
      $region32: #{tpu_custom_call.1} parent=5 // pred_fallthru
        _
      %p569 = scmp.le.s32.totalorder 2, %s16
      // Predicated region
      $region45: #{tpu_custom_call.1} parent=5 // pred_check
        %p570 = pneg %p569
      $region46: #{tpu_custom_call.1} parent=5 // pred_check_branch
        %572 = sbr.rel (%p570) target = $region48
      $region47: #{tpu_custom_call.1} parent=5 // pred_region
        %s573 = ssub.s32 %s16, 2
        // Predicated region
        $region49: #{tpu_custom_call.1} parent=47 // pred_check
          %p574 = pneg %p113
        $region50: #{tpu_custom_call.1} parent=47 // pred_check_branch
          %576 = sbr.rel (%p574) target = $region52
        $region51: #{tpu_custom_call.1} parent=47 // pred_region
          %s577 = sand.u32 %s98, 1
          %s578 = scalar_lea.sflag [#allocation4], %s577
          %s579 = sand.u32 %s98, 1
          %s580 = smul.addr %s579, 32
          %s581 = scalar_lea.vmem [#allocation7], %s580
          %582 = dma.done %s578, 512
        $region52: #{tpu_custom_call.1} parent=47 // pred_fallthru
          _
      $region48: #{tpu_custom_call.1} parent=5 // pred_fallthru
        _
    $region6: #{tpu_custom_call.1} parent=1 // loop_footer
      %s20 = sadd.s32 1, %s16
    $region7: #{tpu_custom_call.1} parent=1 // loop_footer_branch
      %15 = sbr.rel target = $region3
    $region8: #{tpu_custom_call.1} parent=1 // loop_exit
      _
    %583 = vsyncpa [#allocation3], 1
    %s584 = scalar_lea.sflag [#allocation3], 1
    %585 = vsyncpa %s584, 1
    %586 = vsyncpa [#allocation6], 1
    %587 = vsyncpa [#allocation4], 1
    %s588 = scalar_lea.sflag [#allocation4], 1
    %589 = vsyncpa %s588, 1

</llo_original>
